<compile_context>
chip_gen: v5e
topology: v5e:2x2
jax: 0.10.0
libtpu: 0.0.40
codegen_flags: <defaults>
</compile_context>

<pallas_src>
import jax
import jax.numpy as jnp
from jax.experimental import pallas as pl
from jax.experimental.pallas import tpu as pltpu

IN_FEATS = 11
OUT_FEATS = 4
PAD_OUT = 128          # lane-dense output width


def affine_kernel(x_ref, w_ref, b_ref, o_ref):
    # Single fused affine op: (TILE_B, 11) @ (11, 128) + (1, 128).
    o_ref[...] = (
        jnp.dot(x_ref[...], w_ref[...], preferred_element_type=jnp.float32)
        + b_ref[...]
    ).astype(o_ref.dtype)


def fold_affine_chain(params):
    """params: list of (W, b) in PyTorch convention, W: (out, in), b: (out,).

    Returns (w_eff, b_eff) with w_eff: (11, 4) (input-major) and
    b_eff: (1, 4) such that  x @ w_eff + b_eff == Net(x)  exactly
    (the chain has no nonlinearities)."""
    w1, b1 = params[0]
    w_eff = w1.T                        # (in, out)
    b_eff = b1[None, :]                 # (1, out)
    for w, b in params[1:]:
        w_eff = w_eff @ w.T
        b_eff = b_eff @ w.T + b[None, :]
    return w_eff, b_eff


def pad_folded(w_eff, b_eff, pad_out=PAD_OUT):
    """Zero-pad the folded weight/bias to a lane-dense 128-wide slab."""
    in_f, out_f = w_eff.shape
    w_pad = jnp.zeros((in_f, pad_out), jnp.float32).at[:, :out_f].set(w_eff)
    b_pad = jnp.zeros((1, pad_out), jnp.float32).at[:, :out_f].set(b_eff)
    return w_pad, b_pad


def mlp_forward(x, folded_params, *, tile_b=256):
    """x: (B, 11) float32.  folded_params: (w_pad (11,128), b_pad (1,128))."""
    w_pad, b_pad = folded_params
    B = x.shape[0]
    vmem = pl.BlockSpec(memory_space=pltpu.MemorySpace.VMEM)

    if B <= tile_b:
        # Small-batch path: one block, no grid (pure fixed-overhead regime).
        out = pl.pallas_call(
            affine_kernel,
            out_shape=jax.ShapeDtypeStruct((B, PAD_OUT), jnp.float32),
            in_specs=[vmem, vmem, vmem],
            out_specs=vmem,
        )(x, w_pad, b_pad)
        return out[:, :OUT_FEATS]

    # Streaming path: grid over the batch, weights/bias pinned in VMEM.
    # Pad ragged batches to a full tile multiple so every block is aligned.
    n_blocks = pl.cdiv(B, tile_b)
    b_padded = n_blocks * tile_b
    x_in = x if b_padded == B else jnp.pad(x, ((0, b_padded - B), (0, 0)))

    out = pl.pallas_call(
        affine_kernel,
        out_shape=jax.ShapeDtypeStruct((b_padded, PAD_OUT), jnp.float32),
        grid_spec=pltpu.PrefetchScalarGridSpec(
            num_scalar_prefetch=0,
            grid=(n_blocks,),
            in_specs=[
                pl.BlockSpec((tile_b, IN_FEATS), lambda i: (i, 0)),
                pl.BlockSpec((IN_FEATS, PAD_OUT), lambda i: (0, 0)),
                pl.BlockSpec((1, PAD_OUT), lambda i: (0, 0)),
            ],
            out_specs=pl.BlockSpec((tile_b, PAD_OUT), lambda i: (i, 0)),
        ),
        compiler_params=pltpu.CompilerParams(
            dimension_semantics=("parallel",)   # both TCs on v7x
        ),
    )(x_in, w_pad, b_pad)

    return out[:B, :OUT_FEATS]


def init_linear(key, fan_in, fan_out):
    # PyTorch nn.Linear default init: U(-1/sqrt(fan_in), 1/sqrt(fan_in)),
    # stored in PyTorch convention W: (out, in), b: (out,).
    kw, kb = jax.random.split(key)
    bound = 1.0 / jnp.sqrt(float(fan_in))
    w = jax.random.uniform(kw, (fan_out, fan_in), jnp.float32, -bound, bound)
    b = jax.random.uniform(kb, (fan_out,), jnp.float32, -bound, bound)
    return w, b


def torch_style_reference(x, params):
    ref = x
    for w, b in params:
        ref = ref @ w.T + b
    return ref


if __name__ == "__main__":
    key = jax.random.PRNGKey(0)
    k_x, k_xl, k_xr, k1, k2, k3, k4 = jax.random.split(key, 7)

    dims = [(11, 32), (32, 64), (64, 32), (32, 4)]
    params = [init_linear(k, fi, fo)
              for k, (fi, fo) in zip((k1, k2, k3, k4), dims)]

    # One-time preprocessing (outside the hot path): fold + pad.
    w_eff, b_eff = fold_affine_chain(params)
    folded = pad_folded(w_eff, b_eff)

    # ---- small batch (grid-free path) ----
    B = 8
    x = jax.random.normal(k_x, (B, IN_FEATS), dtype=jnp.float32)
    out = jax.block_until_ready(mlp_forward(x, folded))
    ref = torch_style_reference(x, params)
    assert out.shape == (B, OUT_FEATS)
    assert jnp.allclose(out, ref, atol=1e-4, rtol=1e-4)

    # ---- larger batch, tile-divisible (gridded, batch-parallel path) ----
    B_large = 1024
    x_large = jax.random.normal(k_xl, (B_large, IN_FEATS), dtype=jnp.float32)
    out_large = jax.block_until_ready(mlp_forward(x_large, folded))
    ref_large = torch_style_reference(x_large, params)
    assert out_large.shape == (B_large, OUT_FEATS)
    assert jnp.allclose(out_large, ref_large, atol=1e-4, rtol=1e-4)

    # ---- larger ragged batch (gridded path with wrapper-side padding) ----
    B_rag = 1000
    x_rag = jax.random.normal(k_xr, (B_rag, IN_FEATS), dtype=jnp.float32)
    out_rag = jax.block_until_ready(mlp_forward(x_rag, folded))
    ref_rag = torch_style_reference(x_rag, params)
    assert out_rag.shape == (B_rag, OUT_FEATS)
    assert jnp.allclose(out_rag, ref_rag, atol=1e-4, rtol=1e-4)

    print("KERNEL_OK")
</pallas_src>

<mosaic_0001>
module attributes {stable_mosaic.version = 11 : i64} {
  func.func @affine_kernel(%arg0: memref<8x11xf32, #tpu.memory_space<vmem>>, %arg1: memref<11x128xf32, #tpu.memory_space<vmem>>, %arg2: memref<1x128xf32, #tpu.memory_space<vmem>>, %arg3: memref<8x128xf32, #tpu.memory_space<vmem>>) attributes {dimension_semantics = [], scalar_prefetch = 0 : i64, scratch_operands = 0 : i64, tpu.core_type = #tpu.core_type<tc>} {
    %c0 = arith.constant 0 : index
    %c0_0 = arith.constant 0 : index
    %0 = vector.load %arg0[%c0, %c0_0] : memref<8x11xf32, #tpu.memory_space<vmem>>, vector<8x11xf32>
    %c0_1 = arith.constant 0 : index
    %c0_2 = arith.constant 0 : index
    %1 = vector.load %arg1[%c0_1, %c0_2] : memref<11x128xf32, #tpu.memory_space<vmem>>, vector<11x128xf32>
    %cst = arith.constant dense<0.000000e+00> : vector<8x128xf32>
    %2 = tpu.matmul %0, %1, %cst {dimension_numbers = #tpu.dot_dimension_numbers<[1], [0], [0], [1], [0, 0, 1, 1], [], []>} : vector<8x11xf32>, vector<11x128xf32>, vector<8x128xf32> -> vector<8x128xf32>
    %c0_3 = arith.constant 0 : index
    %c0_4 = arith.constant 0 : index
    %3 = vector.load %arg2[%c0_3, %c0_4] : memref<1x128xf32, #tpu.memory_space<vmem>>, vector<1x128xf32>
    %4 = vector.broadcast %3 : vector<1x128xf32> to vector<8x128xf32>
    %5 = arith.addf %2, %4 : vector<8x128xf32>
    %c0_5 = arith.constant 0 : index
    %c0_6 = arith.constant 0 : index
    %6 = vector.load %arg3[%c0_5, %c0_6] : memref<8x128xf32, #tpu.memory_space<vmem>>, vector<8x128xf32>
    tpu.vector_store %arg3[%c0_5, %c0_6], %5 {strides = array<i32>} : memref<8x128xf32, #tpu.memory_space<vmem>>, vector<8x128xf32>,
    return
  }
}

</mosaic_0001>

<llo_original>
// kernel: tpu_custom_call.1
$region0: #{tpu_custom_call.1}
  #allocation0 [shape = 'u32[]', space=smem, size = 0x4, offset = 0x4, fixed_abs, tag = 'smem constant byte address 0x4 - core index']
  #allocation1 [shape = 'u32[72,128]{1,0:T(1,128)}', space=vmem, size = 0x9000, scoped, tag = 'internal scratch']
  %s0 = inlined_call_operand.hbm [shape: f32[8,11], index: 0, kind: input, shape index: {}]
  %s1 = inlined_call_operand.hbm [shape: f32[11,128], index: 1, kind: input, shape index: {}]
  %s2 = inlined_call_operand.vmem [shape: f32[1,128], index: 2, kind: input, shape index: {}]
  %s3 = inlined_call_operand.hbm [shape: f32[8,128], index: 3, kind: output, shape index: {}]
  %s4 = sld [smem:[#allocation0]]
  $region30: #{tpu_custom_call.1} parent=0
    _
  %s6 = ssub.s32 1, %s4
  %s7 = scalar_select 0, %s6, %s4
  $region1: #{tpu_custom_call.1} parent=0
    #allocation2 [shape = 'u8[4096]{0}', space=vmem, size = 0x1000, scoped, tag = 'input window, operand 0, single buffered']
    #allocation3 [shape = 's32[1]{0}', space=sflag, size = 0x4, scoped, tag = 'scoped memory for tpu_custom_call.1']
    #allocation4 [shape = 's32[1]{0}', space=sflag, size = 0x4, scoped, tag = 'scoped memory for tpu_custom_call.1']
    #allocation5 [shape = 'u8[8192]{0}', space=vmem, size = 0x2000, scoped, tag = 'input window, operand 1, single buffered']
    #allocation6 [shape = 's32[1]{0}', space=sflag, size = 0x4, scoped, tag = 'scoped memory for tpu_custom_call.1']
    #allocation7 [shape = 'u8[4096]{0}', space=vmem, size = 0x1000, scoped, tag = 'output window, operand 0, single buffered']
    %8 = vsyncpa [#allocation3], 0
    %9 = vsyncpa [#allocation6], 0
    %10 = vsyncpa [#allocation4], 0
    // Predicated region
    $region2: #{tpu_custom_call.1} parent=1 // pred_check
      _
    $region3: #{tpu_custom_call.1} parent=1 // pred_check_branch
      %12 = sbr.rel (0) target = $region5
    $region4: #{tpu_custom_call.1} parent=1 // pred_region
      %14 = vsyncadd [#allocation3], 0
      %s16 = sshll.u32 %s0, 4
      %s17 = int_to_ptr.hbm [resolvable:$true] %s16
      %s18 = sshll.u32 [#allocation2], 4
      %s19 = int_to_ptr.vmem [resolvable:$true] %s18
      %21 = dma.hbm_to_vmem [thread:$0]  %s17, 128, %s19, [#allocation3]
    $region5: #{tpu_custom_call.1} parent=1 // pred_fallthru
      _
    // Predicated region
    $region6: #{tpu_custom_call.1} parent=1 // pred_check
      _
    $region7: #{tpu_custom_call.1} parent=1 // pred_check_branch
      %23 = sbr.rel (0) target = $region9
    $region8: #{tpu_custom_call.1} parent=1 // pred_region
      %25 = vsyncadd [#allocation6], 0
      %s26 = sshll.u32 %s1, 4
      %s27 = int_to_ptr.hbm [resolvable:$true] %s26
      %s28 = sshll.u32 [#allocation5], 4
      %s29 = int_to_ptr.vmem [resolvable:$true] %s28
      %34 = dma.hbm_to_vmem [thread:$0]  %s27, 256, %s29, [#allocation6], 128, 128, 8
    $region9: #{tpu_custom_call.1} parent=1 // pred_fallthru
      _
    // Predicated region
    $region10: #{tpu_custom_call.1} parent=1 // pred_check
      _
    $region11: #{tpu_custom_call.1} parent=1 // pred_check_branch
      %36 = sbr.rel (0) target = $region13
    $region12: #{tpu_custom_call.1} parent=1 // pred_region
      _
    $region13: #{tpu_custom_call.1} parent=1 // pred_fallthru
      _
    // Predicated region
    $region14: #{tpu_custom_call.1} parent=1 // pred_check
      _
    $region15: #{tpu_custom_call.1} parent=1 // pred_check_branch
      %38 = sbr.rel (0) target = $region17
    $region16: #{tpu_custom_call.1} parent=1 // pred_region
      %40 = dma.done [#allocation3], 128
    $region17: #{tpu_custom_call.1} parent=1 // pred_fallthru
      _
    // Predicated region
    $region18: #{tpu_custom_call.1} parent=1 // pred_check
      _
    $region19: #{tpu_custom_call.1} parent=1 // pred_check_branch
      %42 = sbr.rel (0) target = $region21
    $region20: #{tpu_custom_call.1} parent=1 // pred_region
      %44 = dma.done [#allocation6], 256
    $region21: #{tpu_custom_call.1} parent=1 // pred_fallthru
      _
    %v45 = vld [vmem:[#allocation2] sm:$0xff]
    %v46 = vld [vmem:[#allocation5] sm:$0xff]
    %v47 = vld [vmem:[#allocation5 + $0x8] sm:$0x7]
    %v48 = vld [vmem:[%s2] sm:$0x1]
    %v50 = vperm.slane %v48, 0
    %vm52 = vcmask 89088
    %v54 = vsel %vm52, %v45, 0
    %vm56 = vcmask 1042432
    %v58 = vsel %vm56, %v47, 0
    %60 = vmatpush.msra.mxu0 0.0
    %61 = vmatpush.msra.mxu0 0.0
    %62 = vmatpush.msra.mxu0 0.0
    %63 = vmatpush.msra.mxu0 0.0
    %64 = vmatpush.msra.mxu0 0.0
    %65 = vmatpush.msra.mxu0 0.0
    %66 = vmatpush.msra.mxu0 0.0
    %67 = vmatpush.msra.mxu0 0.0
    %68 = vmatpush.msra.mxu0 0.0
    %69 = vmatpush.msra.mxu0 0.0
    %70 = vmatpush.msra.mxu0 0.0
    %71 = vmatpush.msra.mxu0 0.0
    %72 = vmatpush.msra.mxu0 0.0
    %73 = vmatpush.msra.mxu0 0.0
    %74 = vmatpush.msra.mxu0 %v58
    %75 = vmatpush.msra.mxu0 %v46
    %76 = vmatmul.f32.gmra.mxu0 %v54
    %v77 = vpop.f32.mrf.mxu0
    %v78 = vadd.f32 %v50, %v77
    %79 = vdwg.mxu0
    %80 = vst [vmem:[#allocation7] sm:$0xff] %v78
    // Predicated region
    $region22: #{tpu_custom_call.1} parent=1 // pred_check
      _
    $region23: #{tpu_custom_call.1} parent=1 // pred_check_branch
      %82 = sbr.rel (0) target = $region25
    $region24: #{tpu_custom_call.1} parent=1 // pred_region
      %84 = vsyncadd [#allocation4], 0
      %s86 = sshll.u32 [#allocation7], 4
      %s87 = int_to_ptr.vmem [resolvable:$true] %s86
      %s88 = sshll.u32 %s3, 4
      %s89 = int_to_ptr.hbm [resolvable:$true] %s88
      %91 = dma.vmem_to_hbm [thread:$0]  %s87, 128, %s89, [#allocation4]
    $region25: #{tpu_custom_call.1} parent=1 // pred_fallthru
      _
    // Predicated region
    $region26: #{tpu_custom_call.1} parent=1 // pred_check
      _
    $region27: #{tpu_custom_call.1} parent=1 // pred_check_branch
      %93 = sbr.rel (0) target = $region29
    $region28: #{tpu_custom_call.1} parent=1 // pred_region
      %95 = dma.done [#allocation4], 128
    $region29: #{tpu_custom_call.1} parent=1 // pred_fallthru
      _
    %96 = vsyncpa [#allocation3], 1
    %97 = vsyncpa [#allocation6], 1
    %98 = vsyncpa [#allocation4], 1

</llo_original>
